<compile_context>
chip_gen: v6e
topology: v6e:2x2x1
jax: 0.10.0
libtpu: 0.0.40
codegen_flags: <defaults>
</compile_context>

<pallas_src>
import functools

import jax
import jax.numpy as jnp
from jax.experimental import pallas as pl
from jax.experimental.pallas import tpu as pltpu


def _feature_fetch_kernel(cam_ref, pts_ref, feat_ref, out_ref,
                          acc_ref, cx_ref, y_ref,
                          *, H, W, th, c_pad, num_views):
    """grid = (B, V, N-tiles, H-tiles); the trailing H-tile axis is a reduction.

    feat_ref block : (1, 1, th*c_pad, W)  rows are h-major / c-minor
    pts_ref  block : (1, 3, tn)
    out_ref  block : (1, 1, c_pad, tn)
    acc_ref        : (c_pad, tn) f32  accumulator across H-tiles
    cx_ref         : (W, tn)  matmul dtype, cached column mixing matrix (k-invariant)
    y_ref          : (8, tn)  f32, cached y0 / wy0*vy0 / wy1*vy1 (k-invariant)
    """
    b = pl.program_id(0)
    v = pl.program_id(1)
    k = pl.program_id(3)
    nk = pl.num_programs(3)
    tn = acc_ref.shape[1]
    f32 = jnp.float32

    # ---- k-invariant work: projection + column one-hot, cached in VMEM scratch ----
    @pl.when(k == 0)
    def _():
        acc_ref[...] = jnp.zeros_like(acc_ref)

        px = pts_ref[0, 0:1, :]                      # (1, tn)
        py = pts_ref[0, 1:2, :]
        pz = pts_ref[0, 2:3, :]
        base = (b * num_views + v) * 12

        def cam(i):
            return cam_ref[base + i]

        # Fused camera matrix already folds the grid normalization and the
        # grid_sample un-normalization: rows 0/1 give source pixel coords after /z.
        z = cam(8) * px + cam(9) * py + cam(10) * pz + cam(11)
        rz = pl.reciprocal(z)                        # exact; goes to the EUP slot
        ix = (cam(0) * px + cam(1) * py + cam(2) * pz + cam(3)) * rz
        iy = (cam(4) * px + cam(5) * py + cam(6) * pz + cam(7)) * rz

        x0f = jnp.floor(ix)
        y0f = jnp.floor(iy)
        wx1 = ix - x0f
        wx0 = 1.0 - wx1
        wy1 = iy - y0f
        wy0 = 1.0 - wy1
        x0 = x0f.astype(jnp.int32)
        y0 = y0f.astype(jnp.int32)

        # padding_mode='zeros': out-of-bounds corners carry zero weight.
        vx0 = ((x0 >= 0) & (x0 < W)).astype(f32)
        vx1 = ((x0 + 1 >= 0) & (x0 + 1 < W)).astype(f32)
        vy0 = ((y0 >= 0) & (y0 < H)).astype(f32)
        vy1 = ((y0 + 1 >= 0) & (y0 + 1 < H)).astype(f32)

        # Column one-hot mixing matrix Cx[w, n] (k-invariant -> cached in scratch).
        col_iota = jax.lax.broadcasted_iota(jnp.int32, (W, tn), 0)
        Cx = ((col_iota == x0).astype(f32) * (wx0 * vx0)
              + (col_iota == (x0 + 1)).astype(f32) * (wx1 * vx1))
        cx_ref[...] = Cx.astype(cx_ref.dtype)        # only Cx feeds the MXU in bf16

        # y-side scalars for the per-k row one-hot.
        y_ref[0:1, :] = y0f
        y_ref[1:2, :] = wy0 * vy0
        y_ref[2:3, :] = wy1 * vy1

    # ------------------------------ per H-tile work ------------------------------
    y0f = y_ref[0:1, :]
    wA = y_ref[1:2, :]
    wB = y_ref[2:3, :]

    row_iota = (jax.lax.broadcasted_iota(jnp.int32, (th, tn), 0)
                + k * th).astype(f32)
    Ry = ((row_iota == y0f).astype(f32) * wA
          + (row_iota == (y0f + 1.0)).astype(f32) * wB)            # (th, tn) f32

    feat2 = feat_ref[0, 0]                                         # (th*c_pad, W)
    # Stage 1 (MXU): contract over W.  Rows = th*c_pad -> much better MXU fill
    # than the old (c_pad x th*W) @ (th*W x tn) with its th*W*tn one-hot build.
    G = jnp.dot(feat2, cx_ref[...], preferred_element_type=jnp.float32)  # (th*c_pad, tn)

    # Stage 2 (VPU): weighted reduce over the th rows of this H-tile (f32, 2D ops).
    acc = acc_ref[...]
    for h in range(th):                                            # static unroll
        acc = acc + G[h * c_pad:(h + 1) * c_pad, :] * Ry[h:h + 1, :]
    acc_ref[...] = acc

    @pl.when(k == nk - 1)
    def _():
        out_ref[0, 0] = acc_ref[...].astype(out_ref.dtype)


def _round_up(x, m):
    return -(-x // m) * m


def _divisors(n):
    return sorted([d for d in range(1, n + 1) if n % d == 0], reverse=True)


def _working_set_bytes(c_pad, th, tn, W, itemsize):
    """Rough per-grid-step VMEM footprint including in-kernel intermediates."""
    feat_blk = 2 * th * c_pad * W * itemsize          # double-buffered input block
    pts_blk = 2 * 3 * tn * 4
    out_blk = 2 * c_pad * tn * 4
    scratch = c_pad * tn * 4 + W * tn * itemsize + 8 * tn * 4
    inter = (th * c_pad * tn * 4                      # stage-1 result G
             + 3 * th * tn * 4                        # Ry + iota / compare temps
             + 2 * W * tn * 4                         # Cx build temps (k == 0)
             + c_pad * tn * 4)                        # local accumulator copy
    return feat_blk + pts_blk + out_blk + scratch + inter


def _vmem_limit_bytes():
    # ~100 MiB on v5e/v6e (128 MiB physical), ~51 MiB on v7x (64 MiB physical).
    cap = 64 << 20
    try:
        cap = int(pltpu.get_tpu_info().vmem_capacity_bytes)
    except Exception:
        pass
    return int(min(100 << 20, int(0.8 * cap)))


def feature_fetcher(feature_maps, pts, cam_intrinsics, cam_extrinsics,
                    mode="bilinear", *, matmul_dtype=jnp.bfloat16,
                    tile_n=None, tile_h=None):
    """Pallas implementation of FeatureFetcher.forward.

    feature_maps:   [B, V, C, H, W]
    pts:            [B, 3, N]
    cam_intrinsics: [B, V, 3, 3]
    cam_extrinsics: [B, V, 3, 4] ([R|t], p_cam = R p_world + t), or None
    returns:        [B, V, C, N] float32
    """
    assert mode == "bilinear"  # TODO(synk): 'nearest' grid_sample mode not implemented.
    B, V, C, H, W = feature_maps.shape
    N = pts.shape[2]
    assert H > 1 and W > 1, "grid normalization divides by (H-1)/(W-1)"

    K = cam_intrinsics.astype(jnp.float32)
    if cam_extrinsics is None:
        E = jnp.broadcast_to(jnp.eye(3, 4, dtype=jnp.float32), (B, V, 3, 4))
    else:
        E = cam_extrinsics.astype(jnp.float32)

    # Fused projection matrix: with u = (K[0:2] @ [R|t] @ [p;1]) / z the sampled
    # source pixel is ix = u*W/(W-1) - (0.5*W/(W-1)+0.5); the additive constant is
    # folded through the camera-z row so the kernel computes ix/iy directly.
    P01 = jnp.einsum("bvij,bvjk->bvik", K[..., 0:2, :], E)        # (B, V, 2, 4)
    Pz = E[..., 2:3, :]                                            # (B, V, 1, 4)
    sx = W / (W - 1.0)
    sy = H / (H - 1.0)
    Px = sx * P01[..., 0:1, :] - (0.5 * sx + 0.5) * Pz
    Py = sy * P01[..., 1:2, :] - (0.5 * sy + 0.5) * Pz
    cam_flat = jnp.concatenate([Px, Py, Pz], axis=2).reshape(B * V * 12)
    cam_flat = cam_flat.astype(jnp.float32)                        # 1-D for SMEM

    c_pad = _round_up(C, 8)
    itemsize = jnp.dtype(matmul_dtype).itemsize
    vmem_limit = _vmem_limit_bytes()
    budget = vmem_limit // 2

    # ---- N tile (lane dim): large for feature-map HBM reuse ----
    if tile_n is None:
        tn = min(1024, _round_up(N, 128))
        # v7x has 2 TensorCores: keep the parallel grid extent >= 2.
        while B * V * (_round_up(N, tn) // tn) < 2 and tn > 128:
            tn = max(128, ((tn // 2) // 128) * 128)
    else:
        tn = tile_n
    assert tn % 128 == 0, "tile_n must be a multiple of 128"

    # ---- H tile (reduction axis): largest divisor of H whose working set fits ----
    if tile_h is None:
        while True:
            fitting = [d for d in _divisors(H)
                       if _working_set_bytes(c_pad, d, tn, W, itemsize) <= budget]
            if fitting:
                th = fitting[0]
                break
            if tile_n is None and tn > 128:
                tn = max(128, ((tn // 2) // 128) * 128)
            else:
                th = 1
                break
    else:
        th = tile_h
    assert H % th == 0

    n_pad = _round_up(N, tn)

    # ---- operand layout ----
    feat = feature_maps.astype(matmul_dtype)
    if c_pad != C:
        feat = jnp.pad(feat, ((0, 0), (0, 0), (0, c_pad - C), (0, 0), (0, 0)))
    # h-major / c-minor rows: an H-tile block is a contiguous (th*c_pad, W) slab that
    # feeds the stage-1 MXU matmul directly (no in-kernel reshape / transpose).
    feat_rows = jnp.transpose(feat, (0, 1, 3, 2, 4)).reshape(B, V, H * c_pad, W)

    pts_f = pts.astype(jnp.float32)
    if n_pad != N:
        # Pad with a harmless point; padded output columns are sliced away below.
        pts_f = jnp.pad(pts_f, ((0, 0), (0, 0), (0, n_pad - N)), constant_values=1.0)

    grid = (B, V, n_pad // tn, H // th)

    grid_spec = pltpu.PrefetchScalarGridSpec(
        num_scalar_prefetch=1,                 # fused camera matrices live in SMEM
        grid=grid,
        in_specs=[
            pl.BlockSpec((1, 3, tn), lambda b, v, n, k, cam: (b, 0, n)),
            pl.BlockSpec((1, 1, th * c_pad, W), lambda b, v, n, k, cam: (b, v, k, 0)),
        ],
        out_specs=pl.BlockSpec((1, 1, c_pad, tn), lambda b, v, n, k, cam: (b, v, 0, n)),
        scratch_shapes=[
            pltpu.VMEM((c_pad, tn), jnp.float32),    # accumulator across H-tiles
            pltpu.VMEM((W, tn), matmul_dtype),       # cached Cx (k-invariant)
            pltpu.VMEM((8, tn), jnp.float32),        # cached y0 / wy0 / wy1
        ],
    )

    kernel = functools.partial(_feature_fetch_kernel, H=H, W=W, th=th,
                               c_pad=c_pad, num_views=V)

    out = pl.pallas_call(
        kernel,
        out_shape=jax.ShapeDtypeStruct((B, V, c_pad, n_pad), jnp.float32),
        grid_spec=grid_spec,
        compiler_params=pltpu.CompilerParams(
            dimension_semantics=("parallel", "parallel", "parallel", "arbitrary"),
            vmem_limit_bytes=vmem_limit,
        ),
    )(cam_flat, pts_f, feat_rows)

    return out[:, :, :C, :N]


def _reference(feature_maps, pts, cam_intrinsics, cam_extrinsics):
    """Pure-JAX reference (torch semantics: bilinear, zeros padding, align_corners=False)."""
    B, V, C, H, W = feature_maps.shape
    N = pts.shape[2]
    BV = B * V
    feat = feature_maps.reshape(BV, C, H, W)
    K = cam_intrinsics.reshape(BV, 3, 3)
    E = cam_extrinsics.reshape(BV, 3, 4)
    pts_e = jnp.broadcast_to(pts[:, None], (B, V, 3, N)).reshape(BV, 3, N)

    R = E[:, :, :3]
    t = E[:, :, 3:4]
    p = jnp.einsum("bij,bjn->bin", R, pts_e) + t
    x, y, z = p[:, 0], p[:, 1], p[:, 2]
    nuv = jnp.stack([x / z, y / z, jnp.ones_like(x)], axis=-1)        # [BV, N, 3]
    uv = jnp.einsum("bnk,bjk->bnj", nuv, K)[..., :2]
    gx = (uv[..., 0] - 0.5) / (W - 1) * 2.0 - 1.0
    gy = (uv[..., 1] - 0.5) / (H - 1) * 2.0 - 1.0
    ix = ((gx + 1.0) * W - 1.0) * 0.5
    iy = ((gy + 1.0) * H - 1.0) * 0.5
    x0f = jnp.floor(ix)
    y0f = jnp.floor(iy)
    x0 = x0f.astype(jnp.int32)
    y0 = y0f.astype(jnp.int32)
    x1 = x0 + 1
    y1 = y0 + 1
    wx1 = ix - x0f
    wx0 = 1.0 - wx1
    wy1 = iy - y0f
    wy0 = 1.0 - wy1

    def gather(fb, xi, yi, w_):
        valid = ((xi >= 0) & (xi < W) & (yi >= 0) & (yi < H)).astype(fb.dtype)
        xc = jnp.clip(xi, 0, W - 1)
        yc = jnp.clip(yi, 0, H - 1)
        vals = fb[:, yc, xc]                                           # [C, N]
        return vals * (w_ * valid)[None, :]

    def per_view(fb, x0b, x1b, y0b, y1b, wx0b, wx1b, wy0b, wy1b):
        return (gather(fb, x0b, y0b, wx0b * wy0b)
                + gather(fb, x1b, y0b, wx1b * wy0b)
                + gather(fb, x0b, y1b, wx0b * wy1b)
                + gather(fb, x1b, y1b, wx1b * wy1b))

    out = jax.vmap(per_view)(feat, x0, x1, y0, y1, wx0, wx1, wy0, wy1)
    return out.reshape(B, V, C, N)


if __name__ == "__main__":
    B, V, C, H, W, N = 2, 2, 4, 16, 16, 8
    key = jax.random.PRNGKey(0)
    k1, k2, k3, k4 = jax.random.split(key, 4)

    feature_maps = jax.random.normal(k1, (B, V, C, H, W), dtype=jnp.float32)

    # Points in front of the camera (positive z).
    pts_xy = jax.random.uniform(k2, (B, 2, N), minval=-3.0, maxval=3.0, dtype=jnp.float32)
    pts_z = jax.random.uniform(k3, (B, 1, N), minval=4.0, maxval=8.0, dtype=jnp.float32)
    pts = jnp.concatenate([pts_xy, pts_z], axis=1)

    # Intrinsics: focal 8, principal point at image center.
    Kmat = jnp.array([[8.0, 0.0, 8.0],
                      [0.0, 8.0, 8.0],
                      [0.0, 0.0, 1.0]], dtype=jnp.float32)
    cam_intrinsics = jnp.tile(Kmat, (B, V, 1, 1))

    # Extrinsics: identity rotation, small per-view translation.
    R = jnp.tile(jnp.eye(3, dtype=jnp.float32), (B, V, 1, 1))
    t = jax.random.uniform(k4, (B, V, 3, 1), minval=-0.5, maxval=0.5, dtype=jnp.float32)
    cam_extrinsics = jnp.concatenate([R, t], axis=-1)

    ref = _reference(feature_maps, pts, cam_intrinsics, cam_extrinsics)

    # Strict f32 path; tile_h=8 exercises the H-tile reduction accumulator (2 steps).
    out_f32 = feature_fetcher(feature_maps, pts, cam_intrinsics, cam_extrinsics,
                              matmul_dtype=jnp.float32, tile_n=128, tile_h=8)
    out_f32 = jax.block_until_ready(out_f32)
    assert out_f32.shape == (B, V, C, N), out_f32.shape
    assert jnp.allclose(out_f32, ref, atol=1e-3, rtol=1e-3), \
        float(jnp.max(jnp.abs(out_f32 - ref)))

    # Default fast path (bf16 MXU feed, auto tiles).
    out_bf = feature_fetcher(feature_maps, pts, cam_intrinsics, cam_extrinsics)
    out_bf = jax.block_until_ready(out_bf)
    assert out_bf.shape == (B, V, C, N), out_bf.shape
    assert jnp.allclose(out_bf, ref, atol=1e-1, rtol=1e-1), \
        float(jnp.max(jnp.abs(out_bf - ref)))

    print("KERNEL_OK")
</pallas_src>

<mosaic_0001>
module attributes {stable_mosaic.version = 11 : i64} {
  func.func @_feature_fetch_kernel(%arg0: i32, %arg1: i32, %arg2: i32, %arg3: i32, %arg4: memref<48xf32, #tpu.memory_space<smem>>, %arg5: memref<1x3x128xf32, #tpu.memory_space<vmem>>, %arg6: memref<1x1x64x16xf32, #tpu.memory_space<vmem>>, %arg7: memref<1x1x8x128xf32, #tpu.memory_space<vmem>>, %arg8: memref<8x128xf32, #tpu.memory_space<vmem>>, %arg9: memref<16x128xf32, #tpu.memory_space<vmem>>, %arg10: memref<8x128xf32, #tpu.memory_space<vmem>>) attributes {dimension_semantics = [#tpu.dimension_semantics<parallel>, #tpu.dimension_semantics<parallel>, #tpu.dimension_semantics<parallel>, #tpu.dimension_semantics<arbitrary>], iteration_bounds = array<i64: 2, 2, 1, 2>, scalar_prefetch = 1 : i64, scratch_operands = 3 : i64, tpu.core_type = #tpu.core_type<tc>, window_params = [{transform_indices = @transform_0, window_bounds = array<i64: 1, 3, 128>}, {transform_indices = @transform_1, window_bounds = array<i64: 1, 1, 64, 16>}, {transform_indices = @transform_2, window_bounds = array<i64: 1, 1, 8, 128>}]} {
    %c0_i32 = arith.constant 0 : i32
    %0 = arith.cmpi eq, %arg3, %c0_i32 : i32
    %1 = arith.extui %0 : i1 to i32
    %c0_i32_0 = arith.constant 0 : i32
    %2 = arith.cmpi ne, %1, %c0_i32_0 : i32
    scf.if %2 {
      %cst_16 = arith.constant 0.000000e+00 : f32
      %75 = vector.broadcast %cst_16 : f32 to vector<8x128xf32>
      %c0_17 = arith.constant 0 : index
      %c0_18 = arith.constant 0 : index
      %76 = vector.load %arg8[%c0_17, %c0_18] : memref<8x128xf32, #tpu.memory_space<vmem>>, vector<8x128xf32>
      tpu.vector_store %arg8[%c0_17, %c0_18], %75 {strides = array<i32>} : memref<8x128xf32, #tpu.memory_space<vmem>>, vector<8x128xf32>,
      %c0_19 = arith.constant 0 : index
      %c0_20 = arith.constant 0 : index
      %c0_21 = arith.constant 0 : index
      %77 = vector.load %arg5[%c0_19, %c0_20, %c0_21] : memref<1x3x128xf32, #tpu.memory_space<vmem>>, vector<1x1x128xf32>
      %78 = vector.shape_cast %77 : vector<1x1x128xf32> to vector<1x128xf32>
      %c0_22 = arith.constant 0 : index
      %c1_23 = arith.constant 1 : index
      %c0_24 = arith.constant 0 : index
      %79 = vector.load %arg5[%c0_22, %c1_23, %c0_24] : memref<1x3x128xf32, #tpu.memory_space<vmem>>, vector<1x1x128xf32>
      %80 = vector.shape_cast %79 : vector<1x1x128xf32> to vector<1x128xf32>
      %c0_25 = arith.constant 0 : index
      %c2_26 = arith.constant 2 : index
      %c0_27 = arith.constant 0 : index
      %81 = vector.load %arg5[%c0_25, %c2_26, %c0_27] : memref<1x3x128xf32, #tpu.memory_space<vmem>>, vector<1x1x128xf32>
      %82 = vector.shape_cast %81 : vector<1x1x128xf32> to vector<1x128xf32>
      %c2_i32 = arith.constant 2 : i32
      %83 = arith.muli %arg0, %c2_i32 : i32
      %84 = arith.addi %83, %arg1 : i32
      %c12_i32 = arith.constant 12 : i32
      %85 = arith.muli %84, %c12_i32 : i32
      %c8_i32_28 = arith.constant 8 : i32
      %86 = arith.addi %85, %c8_i32_28 : i32
      %87 = arith.index_cast %86 : i32 to index
      %88 = memref.load %arg4[%87] : memref<48xf32, #tpu.memory_space<smem>>
      %89 = vector.broadcast %88 : f32 to vector<1x128xf32>
      %90 = arith.mulf %89, %78 : vector<1x128xf32>
      %c9_i32 = arith.constant 9 : i32
      %91 = arith.addi %85, %c9_i32 : i32
      %92 = arith.index_cast %91 : i32 to index
      %93 = memref.load %arg4[%92] : memref<48xf32, #tpu.memory_space<smem>>
      %94 = vector.broadcast %93 : f32 to vector<1x128xf32>
      %95 = arith.mulf %94, %80 : vector<1x128xf32>
      %96 = arith.addf %90, %95 : vector<1x128xf32>
      %c10_i32 = arith.constant 10 : i32
      %97 = arith.addi %85, %c10_i32 : i32
      %98 = arith.index_cast %97 : i32 to index
      %99 = memref.load %arg4[%98] : memref<48xf32, #tpu.memory_space<smem>>
      %100 = vector.broadcast %99 : f32 to vector<1x128xf32>
      %101 = arith.mulf %100, %82 : vector<1x128xf32>
      %102 = arith.addf %96, %101 : vector<1x128xf32>
      %c11_i32 = arith.constant 11 : i32
      %103 = arith.addi %85, %c11_i32 : i32
      %104 = arith.index_cast %103 : i32 to index
      %105 = memref.load %arg4[%104] : memref<48xf32, #tpu.memory_space<smem>>
      %106 = vector.broadcast %105 : f32 to vector<1x128xf32>
      %107 = arith.addf %102, %106 : vector<1x128xf32>
      %108 = tpu.reciprocal %107 : vector<1x128xf32> -> vector<1x128xf32>
      %c0_i32_29 = arith.constant 0 : i32
      %109 = arith.addi %85, %c0_i32_29 : i32
      %110 = arith.index_cast %109 : i32 to index
      %111 = memref.load %arg4[%110] : memref<48xf32, #tpu.memory_space<smem>>
      %112 = vector.broadcast %111 : f32 to vector<1x128xf32>
      %113 = arith.mulf %112, %78 : vector<1x128xf32>
      %c1_i32_30 = arith.constant 1 : i32
      %114 = arith.addi %85, %c1_i32_30 : i32
      %115 = arith.index_cast %114 : i32 to index
      %116 = memref.load %arg4[%115] : memref<48xf32, #tpu.memory_space<smem>>
      %117 = vector.broadcast %116 : f32 to vector<1x128xf32>
      %118 = arith.mulf %117, %80 : vector<1x128xf32>
      %119 = arith.addf %113, %118 : vector<1x128xf32>
      %c2_i32_31 = arith.constant 2 : i32
      %120 = arith.addi %85, %c2_i32_31 : i32
      %121 = arith.index_cast %120 : i32 to index
      %122 = memref.load %arg4[%121] : memref<48xf32, #tpu.memory_space<smem>>
      %123 = vector.broadcast %122 : f32 to vector<1x128xf32>
      %124 = arith.mulf %123, %82 : vector<1x128xf32>
      %125 = arith.addf %119, %124 : vector<1x128xf32>
      %c3_i32 = arith.constant 3 : i32
      %126 = arith.addi %85, %c3_i32 : i32
      %127 = arith.index_cast %126 : i32 to index
      %128 = memref.load %arg4[%127] : memref<48xf32, #tpu.memory_space<smem>>
      %129 = vector.broadcast %128 : f32 to vector<1x128xf32>
      %130 = arith.addf %125, %129 : vector<1x128xf32>
      %131 = arith.mulf %130, %108 : vector<1x128xf32>
      %c4_i32 = arith.constant 4 : i32
      %132 = arith.addi %85, %c4_i32 : i32
      %133 = arith.index_cast %132 : i32 to index
      %134 = memref.load %arg4[%133] : memref<48xf32, #tpu.memory_space<smem>>
      %135 = vector.broadcast %134 : f32 to vector<1x128xf32>
      %136 = arith.mulf %135, %78 : vector<1x128xf32>
      %c5_i32 = arith.constant 5 : i32
      %137 = arith.addi %85, %c5_i32 : i32
      %138 = arith.index_cast %137 : i32 to index
      %139 = memref.load %arg4[%138] : memref<48xf32, #tpu.memory_space<smem>>
      %140 = vector.broadcast %139 : f32 to vector<1x128xf32>
      %141 = arith.mulf %140, %80 : vector<1x128xf32>
      %142 = arith.addf %136, %141 : vector<1x128xf32>
      %c6_i32 = arith.constant 6 : i32
      %143 = arith.addi %85, %c6_i32 : i32
      %144 = arith.index_cast %143 : i32 to index
      %145 = memref.load %arg4[%144] : memref<48xf32, #tpu.memory_space<smem>>
      %146 = vector.broadcast %145 : f32 to vector<1x128xf32>
      %147 = arith.mulf %146, %82 : vector<1x128xf32>
      %148 = arith.addf %142, %147 : vector<1x128xf32>
      %c7_i32 = arith.constant 7 : i32
      %149 = arith.addi %85, %c7_i32 : i32
      %150 = arith.index_cast %149 : i32 to index
      %151 = memref.load %arg4[%150] : memref<48xf32, #tpu.memory_space<smem>>
      %152 = vector.broadcast %151 : f32 to vector<1x128xf32>
      %153 = arith.addf %148, %152 : vector<1x128xf32>
      %154 = arith.mulf %153, %108 : vector<1x128xf32>
      %155 = math.floor %131 : vector<1x128xf32>
      %156 = math.floor %154 : vector<1x128xf32>
      %157 = arith.subf %131, %155 : vector<1x128xf32>
      %cst_32 = arith.constant 1.000000e+00 : f32
      %158 = vector.broadcast %cst_32 : f32 to vector<1x128xf32>
      %159 = arith.subf %158, %157 : vector<1x128xf32>
      %160 = arith.subf %154, %156 : vector<1x128xf32>
      %cst_33 = arith.constant 1.000000e+00 : f32
      %161 = vector.broadcast %cst_33 : f32 to vector<1x128xf32>
      %162 = arith.subf %161, %160 : vector<1x128xf32>
      %163 = arith.fptosi %155 : vector<1x128xf32> to vector<1x128xi32>
      %164 = arith.fptosi %156 : vector<1x128xf32> to vector<1x128xi32>
      %c0_i32_34 = arith.constant 0 : i32
      %165 = vector.broadcast %c0_i32_34 : i32 to vector<1x128xi32>
      %166 = arith.cmpi sge, %163, %165 : vector<1x128xi32>
      %c16_i32 = arith.constant 16 : i32
      %167 = vector.broadcast %c16_i32 : i32 to vector<1x128xi32>
      %168 = arith.cmpi slt, %163, %167 : vector<1x128xi32>
      %169 = arith.andi %166, %168 : vector<1x128xi1>
      %170 = arith.extui %169 : vector<1x128xi1> to vector<1x128xi32>
      %171 = arith.sitofp %170 : vector<1x128xi32> to vector<1x128xf32>
      %c1_i32_35 = arith.constant 1 : i32
      %172 = vector.broadcast %c1_i32_35 : i32 to vector<1x128xi32>
      %173 = arith.addi %163, %172 : vector<1x128xi32>
      %c0_i32_36 = arith.constant 0 : i32
      %174 = vector.broadcast %c0_i32_36 : i32 to vector<1x128xi32>
      %175 = arith.cmpi sge, %173, %174 : vector<1x128xi32>
      %c1_i32_37 = arith.constant 1 : i32
      %176 = vector.broadcast %c1_i32_37 : i32 to vector<1x128xi32>
      %177 = arith.addi %163, %176 : vector<1x128xi32>
      %c16_i32_38 = arith.constant 16 : i32
      %178 = vector.broadcast %c16_i32_38 : i32 to vector<1x128xi32>
      %179 = arith.cmpi slt, %177, %178 : vector<1x128xi32>
      %180 = arith.andi %175, %179 : vector<1x128xi1>
      %181 = arith.extui %180 : vector<1x128xi1> to vector<1x128xi32>
      %182 = arith.sitofp %181 : vector<1x128xi32> to vector<1x128xf32>
      %c0_i32_39 = arith.constant 0 : i32
      %183 = vector.broadcast %c0_i32_39 : i32 to vector<1x128xi32>
      %184 = arith.cmpi sge, %164, %183 : vector<1x128xi32>
      %c16_i32_40 = arith.constant 16 : i32
      %185 = vector.broadcast %c16_i32_40 : i32 to vector<1x128xi32>
      %186 = arith.cmpi slt, %164, %185 : vector<1x128xi32>
      %187 = arith.andi %184, %186 : vector<1x128xi1>
      %188 = arith.extui %187 : vector<1x128xi1> to vector<1x128xi32>
      %189 = arith.sitofp %188 : vector<1x128xi32> to vector<1x128xf32>
      %c1_i32_41 = arith.constant 1 : i32
      %190 = vector.broadcast %c1_i32_41 : i32 to vector<1x128xi32>
      %191 = arith.addi %164, %190 : vector<1x128xi32>
      %c0_i32_42 = arith.constant 0 : i32
      %192 = vector.broadcast %c0_i32_42 : i32 to vector<1x128xi32>
      %193 = arith.cmpi sge, %191, %192 : vector<1x128xi32>
      %c1_i32_43 = arith.constant 1 : i32
      %194 = vector.broadcast %c1_i32_43 : i32 to vector<1x128xi32>
      %195 = arith.addi %164, %194 : vector<1x128xi32>
      %c16_i32_44 = arith.constant 16 : i32
      %196 = vector.broadcast %c16_i32_44 : i32 to vector<1x128xi32>
      %197 = arith.cmpi slt, %195, %196 : vector<1x128xi32>
      %198 = arith.andi %193, %197 : vector<1x128xi1>
      %199 = arith.extui %198 : vector<1x128xi1> to vector<1x128xi32>
      %200 = arith.sitofp %199 : vector<1x128xi32> to vector<1x128xf32>
      %201 = tpu.iota {dimensions = array<i32: 0>} : vector<16x128xi32>
      %202 = vector.broadcast %163 : vector<1x128xi32> to vector<16x128xi32>
      %203 = arith.cmpi eq, %201, %202 : vector<16x128xi32>
      %204 = arith.extui %203 : vector<16x128xi1> to vector<16x128xi32>
      %205 = arith.sitofp %204 : vector<16x128xi32> to vector<16x128xf32>
      %206 = arith.mulf %159, %171 : vector<1x128xf32>
      %207 = vector.broadcast %206 : vector<1x128xf32> to vector<16x128xf32>
      %208 = arith.mulf %205, %207 : vector<16x128xf32>
      %c1_i32_45 = arith.constant 1 : i32
      %209 = vector.broadcast %c1_i32_45 : i32 to vector<1x128xi32>
      %210 = arith.addi %163, %209 : vector<1x128xi32>
      %211 = vector.broadcast %210 : vector<1x128xi32> to vector<16x128xi32>
      %212 = arith.cmpi eq, %201, %211 : vector<16x128xi32>
      %213 = arith.extui %212 : vector<16x128xi1> to vector<16x128xi32>
      %214 = arith.sitofp %213 : vector<16x128xi32> to vector<16x128xf32>
      %215 = arith.mulf %157, %182 : vector<1x128xf32>
      %216 = vector.broadcast %215 : vector<1x128xf32> to vector<16x128xf32>
      %217 = arith.mulf %214, %216 : vector<16x128xf32>
      %218 = arith.addf %208, %217 : vector<16x128xf32>
      %c0_46 = arith.constant 0 : index
      %c0_47 = arith.constant 0 : index
      %219 = vector.load %arg9[%c0_46, %c0_47] : memref<16x128xf32, #tpu.memory_space<vmem>>, vector<16x128xf32>
      tpu.vector_store %arg9[%c0_46, %c0_47], %218 {strides = array<i32>} : memref<16x128xf32, #tpu.memory_space<vmem>>, vector<16x128xf32>,
      %c0_48 = arith.constant 0 : index
      %c0_49 = arith.constant 0 : index
      %220 = vector.load %arg10[%c0_48, %c0_49] : memref<8x128xf32, #tpu.memory_space<vmem>>, vector<1x128xf32>
      tpu.vector_store %arg10[%c0_48, %c0_49], %156 {strides = array<i32>} : memref<8x128xf32, #tpu.memory_space<vmem>>, vector<1x128xf32>,
      %221 = arith.mulf %162, %189 : vector<1x128xf32>
      %c1_50 = arith.constant 1 : index
      %c0_51 = arith.constant 0 : index
      %222 = vector.load %arg10[%c1_50, %c0_51] : memref<8x128xf32, #tpu.memory_space<vmem>>, vector<1x128xf32>
      tpu.vector_store %arg10[%c1_50, %c0_51], %221 {strides = array<i32>} : memref<8x128xf32, #tpu.memory_space<vmem>>, vector<1x128xf32>,
      %223 = arith.mulf %160, %200 : vector<1x128xf32>
      %c2_52 = arith.constant 2 : index
      %c0_53 = arith.constant 0 : index
      %224 = vector.load %arg10[%c2_52, %c0_53] : memref<8x128xf32, #tpu.memory_space<vmem>>, vector<1x128xf32>
      tpu.vector_store %arg10[%c2_52, %c0_53], %223 {strides = array<i32>} : memref<8x128xf32, #tpu.memory_space<vmem>>, vector<1x128xf32>,
    } else {
    }
    %c0 = arith.constant 0 : index
    %c0_1 = arith.constant 0 : index
    %3 = vector.load %arg10[%c0, %c0_1] : memref<8x128xf32, #tpu.memory_space<vmem>>, vector<1x128xf32>
    %c1 = arith.constant 1 : index
    %c0_2 = arith.constant 0 : index
    %4 = vector.load %arg10[%c1, %c0_2] : memref<8x128xf32, #tpu.memory_space<vmem>>, vector<1x128xf32>
    %c2 = arith.constant 2 : index
    %c0_3 = arith.constant 0 : index
    %5 = vector.load %arg10[%c2, %c0_3] : memref<8x128xf32, #tpu.memory_space<vmem>>, vector<1x128xf32>
    %6 = tpu.iota {dimensions = array<i32: 0>} : vector<8x128xi32>
    %c8_i32 = arith.constant 8 : i32
    %7 = arith.muli %arg3, %c8_i32 : i32
    %8 = vector.broadcast %7 : i32 to vector<8x128xi32>
    %9 = arith.addi %6, %8 : vector<8x128xi32>
    %10 = arith.sitofp %9 : vector<8x128xi32> to vector<8x128xf32>
    %11 = vector.broadcast %3 : vector<1x128xf32> to vector<8x128xf32>
    %12 = arith.cmpf oeq, %10, %11 : vector<8x128xf32>
    %13 = arith.extui %12 : vector<8x128xi1> to vector<8x128xi32>
    %14 = arith.sitofp %13 : vector<8x128xi32> to vector<8x128xf32>
    %15 = vector.broadcast %4 : vector<1x128xf32> to vector<8x128xf32>
    %16 = arith.mulf %14, %15 : vector<8x128xf32>
    %cst = arith.constant 1.000000e+00 : f32
    %17 = vector.broadcast %cst : f32 to vector<1x128xf32>
    %18 = arith.addf %3, %17 : vector<1x128xf32>
    %19 = vector.broadcast %18 : vector<1x128xf32> to vector<8x128xf32>
    %20 = arith.cmpf oeq, %10, %19 : vector<8x128xf32>
    %21 = arith.extui %20 : vector<8x128xi1> to vector<8x128xi32>
    %22 = arith.sitofp %21 : vector<8x128xi32> to vector<8x128xf32>
    %23 = vector.broadcast %5 : vector<1x128xf32> to vector<8x128xf32>
    %24 = arith.mulf %22, %23 : vector<8x128xf32>
    %25 = arith.addf %16, %24 : vector<8x128xf32>
    %c0_4 = arith.constant 0 : index
    %c0_5 = arith.constant 0 : index
    %c0_6 = arith.constant 0 : index
    %c0_7 = arith.constant 0 : index
    %26 = vector.load %arg6[%c0_4, %c0_5, %c0_6, %c0_7] : memref<1x1x64x16xf32, #tpu.memory_space<vmem>>, vector<1x1x64x16xf32>
    %27 = vector.shape_cast %26 : vector<1x1x64x16xf32> to vector<64x16xf32>
    %c0_8 = arith.constant 0 : index
    %c0_9 = arith.constant 0 : index
    %28 = vector.load %arg9[%c0_8, %c0_9] : memref<16x128xf32, #tpu.memory_space<vmem>>, vector<16x128xf32>
    %cst_10 = arith.constant dense<0.000000e+00> : vector<64x128xf32>
    %29 = tpu.matmul %27, %28, %cst_10 {dimension_numbers = #tpu.dot_dimension_numbers<[1], [0], [0], [1], [0, 0, 1, 1], [], []>} : vector<64x16xf32>, vector<16x128xf32>, vector<64x128xf32> -> vector<64x128xf32>
    %c0_11 = arith.constant 0 : index
    %c0_12 = arith.constant 0 : index
    %30 = vector.load %arg8[%c0_11, %c0_12] : memref<8x128xf32, #tpu.memory_space<vmem>>, vector<8x128xf32>
    %31 = vector.extract_strided_slice %29 {offsets = [0, 0], sizes = [8, 128], strides = [1, 1]} : vector<64x128xf32> to vector<8x128xf32>
    %32 = vector.extract_strided_slice %25 {offsets = [0, 0], sizes = [1, 128], strides = [1, 1]} : vector<8x128xf32> to vector<1x128xf32>
    %33 = vector.broadcast %32 : vector<1x128xf32> to vector<8x128xf32>
    %34 = arith.mulf %31, %33 : vector<8x128xf32>
    %35 = arith.addf %30, %34 : vector<8x128xf32>
    %36 = vector.extract_strided_slice %29 {offsets = [8, 0], sizes = [8, 128], strides = [1, 1]} : vector<64x128xf32> to vector<8x128xf32>
    %37 = vector.extract_strided_slice %25 {offsets = [1, 0], sizes = [1, 128], strides = [1, 1]} : vector<8x128xf32> to vector<1x128xf32>
    %38 = vector.broadcast %37 : vector<1x128xf32> to vector<8x128xf32>
    %39 = arith.mulf %36, %38 : vector<8x128xf32>
    %40 = arith.addf %35, %39 : vector<8x128xf32>
    %41 = vector.extract_strided_slice %29 {offsets = [16, 0], sizes = [8, 128], strides = [1, 1]} : vector<64x128xf32> to vector<8x128xf32>
    %42 = vector.extract_strided_slice %25 {offsets = [2, 0], sizes = [1, 128], strides = [1, 1]} : vector<8x128xf32> to vector<1x128xf32>
    %43 = vector.broadcast %42 : vector<1x128xf32> to vector<8x128xf32>
    %44 = arith.mulf %41, %43 : vector<8x128xf32>
    %45 = arith.addf %40, %44 : vector<8x128xf32>
    %46 = vector.extract_strided_slice %29 {offsets = [24, 0], sizes = [8, 128], strides = [1, 1]} : vector<64x128xf32> to vector<8x128xf32>
    %47 = vector.extract_strided_slice %25 {offsets = [3, 0], sizes = [1, 128], strides = [1, 1]} : vector<8x128xf32> to vector<1x128xf32>
    %48 = vector.broadcast %47 : vector<1x128xf32> to vector<8x128xf32>
    %49 = arith.mulf %46, %48 : vector<8x128xf32>
    %50 = arith.addf %45, %49 : vector<8x128xf32>
    %51 = vector.extract_strided_slice %29 {offsets = [32, 0], sizes = [8, 128], strides = [1, 1]} : vector<64x128xf32> to vector<8x128xf32>
    %52 = vector.extract_strided_slice %25 {offsets = [4, 0], sizes = [1, 128], strides = [1, 1]} : vector<8x128xf32> to vector<1x128xf32>
    %53 = vector.broadcast %52 : vector<1x128xf32> to vector<8x128xf32>
    %54 = arith.mulf %51, %53 : vector<8x128xf32>
    %55 = arith.addf %50, %54 : vector<8x128xf32>
    %56 = vector.extract_strided_slice %29 {offsets = [40, 0], sizes = [8, 128], strides = [1, 1]} : vector<64x128xf32> to vector<8x128xf32>
    %57 = vector.extract_strided_slice %25 {offsets = [5, 0], sizes = [1, 128], strides = [1, 1]} : vector<8x128xf32> to vector<1x128xf32>
    %58 = vector.broadcast %57 : vector<1x128xf32> to vector<8x128xf32>
    %59 = arith.mulf %56, %58 : vector<8x128xf32>
    %60 = arith.addf %55, %59 : vector<8x128xf32>
    %61 = vector.extract_strided_slice %29 {offsets = [48, 0], sizes = [8, 128], strides = [1, 1]} : vector<64x128xf32> to vector<8x128xf32>
    %62 = vector.extract_strided_slice %25 {offsets = [6, 0], sizes = [1, 128], strides = [1, 1]} : vector<8x128xf32> to vector<1x128xf32>
    %63 = vector.broadcast %62 : vector<1x128xf32> to vector<8x128xf32>
    %64 = arith.mulf %61, %63 : vector<8x128xf32>
    %65 = arith.addf %60, %64 : vector<8x128xf32>
    %66 = vector.extract_strided_slice %29 {offsets = [56, 0], sizes = [8, 128], strides = [1, 1]} : vector<64x128xf32> to vector<8x128xf32>
    %67 = vector.extract_strided_slice %25 {offsets = [7, 0], sizes = [1, 128], strides = [1, 1]} : vector<8x128xf32> to vector<1x128xf32>
    %68 = vector.broadcast %67 : vector<1x128xf32> to vector<8x128xf32>
    %69 = arith.mulf %66, %68 : vector<8x128xf32>
    %70 = arith.addf %65, %69 : vector<8x128xf32>
    %c0_13 = arith.constant 0 : index
    %c0_14 = arith.constant 0 : index
    %71 = vector.load %arg8[%c0_13, %c0_14] : memref<8x128xf32, #tpu.memory_space<vmem>>, vector<8x128xf32>
    tpu.vector_store %arg8[%c0_13, %c0_14], %70 {strides = array<i32>} : memref<8x128xf32, #tpu.memory_space<vmem>>, vector<8x128xf32>,
    %c1_i32 = arith.constant 1 : i32
    %72 = arith.cmpi eq, %arg3, %c1_i32 : i32
    %73 = arith.extui %72 : i1 to i32
    %c0_i32_15 = arith.constant 0 : i32
    %74 = arith.cmpi ne, %73, %c0_i32_15 : i32
    scf.if %74 {
      %c0_16 = arith.constant 0 : index
      %c0_17 = arith.constant 0 : index
      %75 = vector.load %arg8[%c0_16, %c0_17] : memref<8x128xf32, #tpu.memory_space<vmem>>, vector<8x128xf32>
      %c0_18 = arith.constant 0 : index
      %c0_19 = arith.constant 0 : index
      %c0_20 = arith.constant 0 : index
      %c0_21 = arith.constant 0 : index
      %76 = vector.load %arg7[%c0_18, %c0_19, %c0_20, %c0_21] : memref<1x1x8x128xf32, #tpu.memory_space<vmem>>, vector<1x1x8x128xf32>
      %77 = vector.shape_cast %76 : vector<1x1x8x128xf32> to vector<8x128xf32>
      %78 = vector.shape_cast %75 : vector<8x128xf32> to vector<1x1x8x128xf32>
      tpu.vector_store %arg7[%c0_18, %c0_19, %c0_20, %c0_21], %78 {strides = array<i32>} : memref<1x1x8x128xf32, #tpu.memory_space<vmem>>, vector<1x1x8x128xf32>,
    } else {
    }
    return
  }
  func.func @transform_0(%arg0: i32, %arg1: i32, %arg2: i32, %arg3: i32, %arg4: memref<48xf32, #tpu.memory_space<smem>>) -> (i32, i32, i32) {
    %c0_i32 = arith.constant 0 : i32
    %c0_i32_0 = arith.constant 0 : i32
    return %arg0, %c0_i32, %arg2 : i32, i32, i32
  }
  func.func @transform_1(%arg0: i32, %arg1: i32, %arg2: i32, %arg3: i32, %arg4: memref<48xf32, #tpu.memory_space<smem>>) -> (i32, i32, i32, i32) {
    %c0_i32 = arith.constant 0 : i32
    %c0_i32_0 = arith.constant 0 : i32
    return %arg0, %arg1, %arg3, %c0_i32 : i32, i32, i32, i32
  }
  func.func @transform_2(%arg0: i32, %arg1: i32, %arg2: i32, %arg3: i32, %arg4: memref<48xf32, #tpu.memory_space<smem>>) -> (i32, i32, i32, i32) {
    %c0_i32 = arith.constant 0 : i32
    %c0_i32_0 = arith.constant 0 : i32
    return %arg0, %arg1, %c0_i32, %arg2 : i32, i32, i32, i32
  }
}

</mosaic_0001>

<llo_original>
// kernel: tpu_custom_call.1
$region0: #{tpu_custom_call.1}
  #allocation0 [shape = 'u32[]', space=smem, size = 0x4, offset = 0x4, fixed_abs, tag = 'smem constant byte address 0x4 - core index']
  #allocation1 [shape = 'u32[144,128]{1,0:T(1,128)}', space=vmem, size = 0x12000, scoped, tag = 'internal scratch']
  #allocation2 [shape = 'f32[8,128]{1,0:T(8,128)}', space=vmem, size = 0x1000, scoped, tag = 'scratch operand']
  #allocation3 [shape = 'f32[16,128]{1,0:T(8,128)}', space=vmem, size = 0x2000, scoped, tag = 'scratch operand']
  #allocation4 [shape = 'f32[8,128]{1,0:T(8,128)}', space=vmem, size = 0x1000, scoped, tag = 'scratch operand']
  #allocation5 [shape = 's32[1]{0}', space=sflag, size = 0x4, scoped, tag = 'scoped memory for tpu_custom_call.1']
  #allocation6 [shape = 'u8[512]{0}', space=smem, size = 0x200, scoped, tag = 'prefetched SMEM operand 0']
  %s0 = inlined_call_operand.vmem [shape: f32[48], index: 0, kind: input, shape index: {}]
  %s1 = inlined_call_operand.vmem [shape: f32[2,3,128], index: 1, kind: input, shape index: {}]
  %s2 = inlined_call_operand.vmem [shape: f32[2,2,128,16], index: 2, kind: input, shape index: {}]
  %s3 = inlined_call_operand.hbm [shape: f32[2,2,8,128], index: 3, kind: output, shape index: {}]
  %s4 = sld [smem:[#allocation0]]
  $region49: #{tpu_custom_call.1} parent=0
    _
  %s6 = ssub.s32 1, %s4
  %s7 = scalar_select 0, %s6, %s4
  %s8 = sshll.u32 %s0, 4
  %s9 = int_to_ptr.vmem [resolvable:$true] %s8
  %11 = dma.vmem_to_smem %s9, 16, [#allocation6], [#allocation5]
  %12 = dma.done [#allocation5], 16
  %13 = sfence
  $region1: #{tpu_custom_call.1} parent=0
    #allocation7 [shape = 'u8[8192]{0}', space=vmem, size = 0x2000, scoped, tag = 'output window, operand 0']
    #allocation8 [shape = 's32[2]{0}', space=sflag, size = 0x8, scoped, tag = 'scoped memory for tpu_custom_call.1']
    %14 = vsyncpa [#allocation8], 0
    %s15 = scalar_lea.sflag [#allocation8], 1
    %16 = vsyncpa %s15, 0
    loop: start=0, step=1, limit=10
    $region2: #{tpu_custom_call.1} parent=1 // loop_pre_header
      _
    $region3: #{tpu_custom_call.1} parent=1 // loop_header
      %s18 = sphi 0, %s22
      %p19 = scmp.ge.s32.totalorder %s18, 10
      %s25 = sphi 0, %s51
      %s26 = sphi 0, %s47
      %s27 = sphi 0, %s43
      %s28 = sphi 0, %s39
      %s29 = sphi 0, %s25
      %s30 = sphi 0, %s26
      %s31 = sphi 0, %s27
      %s32 = sphi 0, %s28
      %s33 = sphi 0, %s29
      %s34 = sphi 0, %s30
      %s35 = sphi 0, %s31
      %s36 = sphi 0, %s32
      %s56 = sphi 0, %s58
      %s59 = sphi 0, %s56
      %s60 = sphi 0, %s59
      %s76 = sphi 0, %s60
      %s86 = sphi 0, %s88
      %s89 = sphi 0, %s86
      %s90 = sphi 0, %s89
      %s106 = sphi 0, %s90
      %s116 = sphi 0, %s118
      %s119 = sphi 0, %s116
      %s120 = sphi 0, %s119
      %s136 = sphi 0, %s120
    $region4: #{tpu_custom_call.1} parent=1 // loop_header_branch
      %21 = sbr.rel (%p19) target = $region8
    $region5: #{tpu_custom_call.1} parent=1 // loop_body
      %s23 = ssub.s32 %s18, 1
      %s24 = ssub.s32 %s18, 2
      %s37 = sadd.s32 1, %s28
      %p38 = scmp.ge.s32.totalorder %s37, 2
      %s39 = scalar_select %p38, 0, %s37
      %s40 = sadd.s32 1, %s27
      %s41 = scalar_select %p38, %s40, %s27
      %p42 = scmp.ge.s32.totalorder %s41, 1
      %s43 = scalar_select %p42, 0, %s41
      %s44 = sadd.s32 1, %s26
      %s45 = scalar_select %p42, %s44, %s26
      %p46 = scmp.ge.s32.totalorder %s45, 2
      %s47 = scalar_select %p46, 0, %s45
      %s48 = sadd.s32 1, %s25
      %s49 = scalar_select %p46, %s48, %s25
      %p50 = scmp.ge.s32.totalorder %s49, 2
      %s51 = scalar_select %p50, 0, %s49
      %s52 = ssub.s32 %s25, %s51
      %s53 = ssub.s32 %s27, %s43
      %s54 = sor.u32 %s52, %s53
      %p55 = scmp.eq.s32.totalorder %s54, 0
      %s57 = sadd.s32 %s56, 1
      %s58 = scalar_select %p55, %s56, %s57
      %p61 = pneg %p55
      %p62 = scmp.eq.s32.totalorder %s18, 7
      %p63 = por %p61, %p62
      %p64 = scmp.ne.s32.totalorder %s56, %s59
      %p65 = scmp.eq.s32.totalorder %s18, 0
      %p66 = por %p64, %p65
      %p67 = scmp.ne.s32.totalorder %s56, %s59
      %p68 = scmp.eq.s32.totalorder %s23, 7
      %p69 = por %p67, %p68
      %p70 = scmp.ne.s32.totalorder %s59, %s60
      %p71 = scmp.eq.s32.totalorder %s23, 0
      %p72 = por %p70, %p71
      %p73 = scmp.ne.s32.totalorder %s59, %s60
      %p74 = scmp.eq.s32.totalorder %s24, 7
      %p75 = por %p73, %p74
      %p77 = scmp.ne.s32.totalorder %s60, %s76
      %p78 = scmp.eq.s32.totalorder %s24, 0
      %p79 = por %p77, %p78
      %s80 = ssub.s32 %s25, %s51
      %s81 = ssub.s32 %s26, %s47
      %s82 = sor.u32 %s80, %s81
      %s83 = ssub.s32 %s28, %s39
      %s84 = sor.u32 %s82, %s83
      %p85 = scmp.eq.s32.totalorder %s84, 0
      %s87 = sadd.s32 %s86, 1
      %s88 = scalar_select %p85, %s86, %s87
      %p91 = pneg %p85
      %p92 = scmp.eq.s32.totalorder %s18, 7
      %p93 = por %p91, %p92
      %p94 = scmp.ne.s32.totalorder %s86, %s89
      %p95 = scmp.eq.s32.totalorder %s18, 0
      %p96 = por %p94, %p95
      %p97 = scmp.ne.s32.totalorder %s86, %s89
      %p98 = scmp.eq.s32.totalorder %s23, 7
      %p99 = por %p97, %p98
      %p100 = scmp.ne.s32.totalorder %s89, %s90
      %p101 = scmp.eq.s32.totalorder %s23, 0
      %p102 = por %p100, %p101
      %p103 = scmp.ne.s32.totalorder %s89, %s90
      %p104 = scmp.eq.s32.totalorder %s24, 7
      %p105 = por %p103, %p104
      %p107 = scmp.ne.s32.totalorder %s90, %s106
      %p108 = scmp.eq.s32.totalorder %s24, 0
      %p109 = por %p107, %p108
      %s110 = ssub.s32 %s25, %s51
      %s111 = ssub.s32 %s26, %s47
      %s112 = sor.u32 %s110, %s111
      %s113 = ssub.s32 %s27, %s43
      %s114 = sor.u32 %s112, %s113
      %p115 = scmp.eq.s32.totalorder %s114, 0
      %s117 = sadd.s32 %s116, 1
      %s118 = scalar_select %p115, %s116, %s117
      %p121 = pneg %p115
      %p122 = scmp.eq.s32.totalorder %s18, 7
      %p123 = por %p121, %p122
      %p124 = scmp.ne.s32.totalorder %s116, %s119
      %p125 = scmp.eq.s32.totalorder %s18, 0
      %p126 = por %p124, %p125
      %p127 = scmp.ne.s32.totalorder %s116, %s119
      %p128 = scmp.eq.s32.totalorder %s23, 7
      %p129 = por %p127, %p128
      %p130 = scmp.ne.s32.totalorder %s119, %s120
      %p131 = scmp.eq.s32.totalorder %s23, 0
      %p132 = por %p130, %p131
      %p133 = scmp.ne.s32.totalorder %s119, %s120
      %p134 = scmp.eq.s32.totalorder %s24, 7
      %p135 = por %p133, %p134
      %p137 = scmp.ne.s32.totalorder %s120, %s136
      %p138 = scmp.eq.s32.totalorder %s24, 0
      %p139 = por %p137, %p138
      %p140 = scmp.le.s32.totalorder 1, %s18
      %p141 = scmp.lt.s32.totalorder %s18, 9
      %p142 = pnand %p140, %p141
      %p143 = pneg %p142
      // Predicated region
      $region9: #{tpu_custom_call.1} parent=5 // pred_check
        _
      $region10: #{tpu_custom_call.1} parent=5 // pred_check_branch
        %145 = sbr.rel (%p142) target = $region12
      $region11: #{tpu_custom_call.1} parent=5 // pred_region
        %s146 = ssub.s32 %s18, 1
      $region12: #{tpu_custom_call.1} parent=5 // pred_fallthru
        _
      %p147 = scmp.lt.s32.totalorder %s18, 8
      // Predicated region
      $region13: #{tpu_custom_call.1} parent=5 // pred_check
        %p148 = pneg %p147
      $region14: #{tpu_custom_call.1} parent=5 // pred_check_branch
        %150 = sbr.rel (%p148) target = $region16
      $region15: #{tpu_custom_call.1} parent=5 // pred_region
        // Predicated region
        $region17: #{tpu_custom_call.1} parent=15 // pred_check
          %p151 = pneg %p66
        $region18: #{tpu_custom_call.1} parent=15 // pred_check_branch
          %153 = sbr.rel (%p151) target = $region20
        $region19: #{tpu_custom_call.1} parent=15 // pred_region
          %p154 = scmp.lt.s32.totalorder %s25, 1
          %s155 = scalar_select %p154, %s25, 1
          %p156 = scmp.lt.s32.totalorder %s27, 0
          %s157 = scalar_select %p156, %s27, 0
          %s158 = sadd.s32 %s157, %s155
          %s159 = smul.addr %s158, 4
          %s160 = scalar_lea.vmem %s1, %s159
        $region20: #{tpu_custom_call.1} parent=15 // pred_fallthru
          _
        // Predicated region
        $region21: #{tpu_custom_call.1} parent=15 // pred_check
          %p161 = pneg %p96
        $region22: #{tpu_custom_call.1} parent=15 // pred_check_branch
          %163 = sbr.rel (%p161) target = $region24
        $region23: #{tpu_custom_call.1} parent=15 // pred_region
          %s164 = smul.u32 8, %s28
          %p165 = scmp.lt.s32.totalorder %s25, 1
          %s166 = scalar_select %p165, %s25, 1
          %p167 = scmp.lt.s32.totalorder %s26, 1
          %s168 = scalar_select %p167, %s26, 1
          %p169 = scmp.lt.s32.totalorder %s164, 15
          %s170 = scalar_select %p169, %s164, 15
          %s171 = smul.addr %s168, 16
          %s172 = sadd.s32 %s170, %s171
          %s173 = smul.addr %s166, 32
          %s174 = sadd.s32 %s172, %s173
          %s175 = smul.addr %s174, 8
          %s176 = scalar_lea.vmem %s2, %s175
          %s177 = smul.u32 8, %s28
        $region24: #{tpu_custom_call.1} parent=15 // pred_fallthru
          _
      $region16: #{tpu_custom_call.1} parent=5 // pred_fallthru
        _
      %p178 = scmp.le.s32.totalorder 1, %s18
      %p179 = scmp.lt.s32.totalorder %s18, 9
      %p180 = pnand %p178, %p179
      %p181 = pneg %p180
      // Predicated region
      $region25: #{tpu_custom_call.1} parent=5 // pred_check
        _
      $region26: #{tpu_custom_call.1} parent=5 // pred_check_branch
        %183 = sbr.rel (%p180) target = $region28
      $region27: #{tpu_custom_call.1} parent=5 // pred_region
        %s184 = ssub.s32 %s18, 1
        %p185 = scmp.lt.s32.totalorder %s29, 1
        %s186 = scalar_select %p185, %s29, 1
        %p187 = scmp.lt.s32.totalorder %s31, 0
        %s188 = scalar_select %p187, %s31, 0
        %s189 = sadd.s32 %s188, %s186
        %s190 = smul.addr %s189, 4
        %s191 = scalar_lea.vmem %s1, %s190
        %p192 = pneg %p72
        %p193 = pneg %p69
        %s194 = smul.u32 8, %s32
        %p195 = scmp.lt.s32.totalorder %s29, 1
        %s196 = scalar_select %p195, %s29, 1
        %p197 = scmp.lt.s32.totalorder %s30, 1
        %s198 = scalar_select %p197, %s30, 1
        %p199 = scmp.lt.s32.totalorder %s194, 15
        %s200 = scalar_select %p199, %s194, 15
        %s201 = smul.addr %s198, 16
        %s202 = sadd.s32 %s200, %s201
        %s203 = smul.addr %s196, 32
        %s204 = sadd.s32 %s202, %s203
        %s205 = smul.addr %s204, 8
        %s206 = scalar_lea.vmem %s2, %s205
        %p207 = pneg %p102
        %p208 = pneg %p99
        %p209 = pneg %p132
        %p210 = pneg %p129
        %s211 = sand.u32 %s119, 1
        %s212 = scalar_lea.sflag [#allocation8], %s211
        %s213 = sand.u32 %s119, 1
        %s214 = smul.addr %s213, 8
        %s215 = scalar_lea.vmem [#allocation7], %s214
        %p216 = scmp.lt.s32.totalorder %s29, 1
        %s217 = scalar_select %p216, %s29, 1
        %p218 = scmp.lt.s32.totalorder %s31, 0
        %s219 = scalar_select %p218, %s31, 0
        %s220 = sadd.s32 %s219, %s217
        %s221 = smul.addr %s220, 4
        %s222 = scalar_lea.vmem %s1, %s221
        %s223 = smul.u32 8, %s32
        %p224 = scmp.lt.s32.totalorder %s29, 1
        %s225 = scalar_select %p224, %s29, 1
        %p226 = scmp.lt.s32.totalorder %s30, 1
        %s227 = scalar_select %p226, %s30, 1
        %p228 = scmp.lt.s32.totalorder %s223, 15
        %s229 = scalar_select %p228, %s223, 15
        %s230 = smul.addr %s227, 16
        %s231 = sadd.s32 %s229, %s230
        %s232 = smul.addr %s225, 32
        %s233 = sadd.s32 %s231, %s232
        %s234 = smul.addr %s233, 8
        %s235 = scalar_lea.vmem %s2, %s234
        %s236 = smul.u32 8, %s32
        %p237 = scmp.eq.s32.totalorder %s32, 0
        // Predicated region
        $region29: #{tpu_custom_call.1} parent=27 // pred_check
          %p238 = pneg %p237
        $region30: #{tpu_custom_call.1} parent=27 // pred_check_branch
          %240 = sbr.rel (%p238) target = $region32
        $region31: #{tpu_custom_call.1} parent=27 // pred_region
          %241 = vst [vmem:[#allocation2] sm:$0xff] 0.0
          %v242 = vld [vmem:[%s222] sm:$0x1]
          %v243 = vld [vmem:[%s222 + $0x1] sm:$0x1]
          %v244 = vld [vmem:[%s222 + $0x2] sm:$0x1]
          %s245 = smul.u32 %s29, 2
          %s246 = sadd.s32 %s245, %s30
          %s247 = smul.u32 %s246, 12
          %s248 = sadd.s32 %s247, 8
          %s249 = sld [smem:[#allocation6 + %s248]]
          %v250 = vstv %s249
          %v251 = vmul.f32 %v250, %v242
          %s252 = sadd.s32 %s247, 9
          %s253 = sld [smem:[#allocation6 + %s252]]
          %v254 = vstv %s253
          %v255 = vmul.f32 %v254, %v243
          %v256 = vadd.f32 %v251, %v255
          %s257 = sadd.s32 %s247, 10
          %s258 = sld [smem:[#allocation6 + %s257]]
          %v259 = vstv %s258
          %v260 = vmul.f32 %v259, %v244
          %v261 = vadd.f32 %v256, %v260
          %s262 = sadd.s32 %s247, 11
          %s263 = sld [smem:[#allocation6 + %s262]]
          %v264 = vstv %s263
          %v265 = vadd.f32 %v261, %v264
          %v266 = vrcp.pop %v265
          %s267 = sld [smem:[#allocation6 + %s247]]
          %v268 = vstv %s267
          %v269 = vmul.f32 %v268, %v242
          %s270 = sadd.s32 %s247, 1
          %s271 = sld [smem:[#allocation6 + %s270]]
          %v272 = vstv %s271
          %v273 = vmul.f32 %v272, %v243
          %v274 = vadd.f32 %v269, %v273
          %s275 = sadd.s32 %s247, 2
          %s276 = sld [smem:[#allocation6 + %s275]]
          %v277 = vstv %s276
          %v278 = vmul.f32 %v277, %v244
          %v279 = vadd.f32 %v274, %v278
          %s280 = sadd.s32 %s247, 3
          %s281 = sld [smem:[#allocation6 + %s280]]
          %v282 = vstv %s281
          %v283 = vadd.f32 %v279, %v282
          %v284 = vmul.f32 %v283, %v266
          %s285 = sadd.s32 %s247, 4
          %s286 = sld [smem:[#allocation6 + %s285]]
          %v287 = vstv %s286
          %v288 = vmul.f32 %v287, %v242
          %s289 = sadd.s32 %s247, 5
          %s290 = sld [smem:[#allocation6 + %s289]]
          %v291 = vstv %s290
          %v292 = vmul.f32 %v291, %v243
          %v293 = vadd.f32 %v288, %v292
          %s294 = sadd.s32 %s247, 6
          %s295 = sld [smem:[#allocation6 + %s294]]
          %v296 = vstv %s295
          %v297 = vmul.f32 %v296, %v244
          %v298 = vadd.f32 %v293, %v297
          %s299 = sadd.s32 %s247, 7
          %s300 = sld [smem:[#allocation6 + %s299]]
          %v301 = vstv %s300
          %v302 = vadd.f32 %v298, %v301
          %v303 = vmul.f32 %v302, %v266
          %v304 = vfloor.f32 %v284
          %v305 = vfloor.f32 %v303
          %v306 = vsub.f32 %v284, %v304
          %v307 = vsub.f32 1.0, %v306
          %v308 = vsub.f32 %v303, %v305
          %v309 = vsub.f32 1.0, %v308
          %v310 = vcvt.f32.s32.to.zero.pseudo %v304
          %v311 = vcvt.f32.s32.to.zero.pseudo %v305
          %vm312 = vcmp.ge.s32.totalorder %v310, 0
          %vm313 = vcmp.lt.s32.totalorder %v310, 16
          %vm314 = vmand %vm312, %vm313
          %v315 = vsel %vm314, 1, 0
          %v316 = vcvt.s32.f32 %v315
          %v317 = vadd.s32 %v310, 1
          %vm318 = vcmp.ge.s32.totalorder %v317, 0
          %vm319 = vcmp.lt.s32.totalorder %v317, 16
          %vm320 = vmand %vm318, %vm319
          %v321 = vsel %vm320, 1, 0
          %v322 = vcvt.s32.f32 %v321
          %vm323 = vcmp.ge.s32.totalorder %v311, 0
          %vm324 = vcmp.lt.s32.totalorder %v311, 16
          %vm325 = vmand %vm323, %vm324
          %v326 = vsel %vm325, 1, 0
          %v327 = vcvt.s32.f32 %v326
          %v328 = vadd.s32 %v311, 1
          %vm329 = vcmp.ge.s32.totalorder %v328, 0
          %vm330 = vcmp.lt.s32.totalorder %v328, 16
          %vm331 = vmand %vm329, %vm330
          %v332 = vsel %vm331, 1, 0
          %v333 = vcvt.s32.f32 %v332
          %v334 = vlaneseq
          %v335 = vshrl.u32 %v334, 7
          %v336 = vadd.s32 %v335, 8
          %v337 = vlaneseq
          %v338 = vshrl.u32 %v337, 7
          %v339 = vsub.s32 0, %v338
          %v340 = vrot.slane %v310, %v339
          %vm341 = vcmp.eq.s32.totalorder %v335, %v340
          %vm342 = vcmp.eq.s32.totalorder %v336, %v340
          %v343 = vsel %vm341, 1, 0
          %v344 = vsel %vm342, 1, 0
          %v345 = vcvt.s32.f32 %v343
          %v346 = vcvt.s32.f32 %v344
          %v347 = vmul.f32 %v307, %v316
          %v348 = vlaneseq
          %v349 = vshrl.u32 %v348, 7
          %v350 = vsub.s32 0, %v349
          %v351 = vrot.slane %v347, %v350
          %v352 = vmul.f32 %v345, %v351
          %v353 = vmul.f32 %v346, %v351
          %v354 = vlaneseq
          %v355 = vshrl.u32 %v354, 7
          %v356 = vsub.s32 0, %v355
          %v357 = vrot.slane %v317, %v356
          %vm358 = vcmp.eq.s32.totalorder %v335, %v357
          %vm359 = vcmp.eq.s32.totalorder %v336, %v357
          %v360 = vsel %vm358, 1, 0
          %v361 = vsel %vm359, 1, 0
          %v362 = vcvt.s32.f32 %v360
          %v363 = vcvt.s32.f32 %v361
          %v364 = vmul.f32 %v306, %v322
          %v365 = vlaneseq
          %v366 = vshrl.u32 %v365, 7
          %v367 = vsub.s32 0, %v366
          %v368 = vrot.slane %v364, %v367
          %v369 = vmul.f32 %v362, %v368
          %v370 = vmul.f32 %v363, %v368
          %v371 = vadd.f32 %v352, %v369
          %v372 = vadd.f32 %v353, %v370
          %373 = vst [vmem:[#allocation3] sm:$0xff] %v371
          %374 = vst [vmem:[#allocation3 + $0x8] sm:$0xff] %v372
          %375 = vst [vmem:[#allocation4] sm:$0x1] %v305
          %v376 = vmul.f32 %v309, %v327
          %377 = vst [vmem:[#allocation4 + $0x1] sm:$0x1] %v376
          %v378 = vmul.f32 %v308, %v333
          %379 = vst [vmem:[#allocation4 + $0x2] sm:$0x1] %v378
        $region32: #{tpu_custom_call.1} parent=27 // pred_fallthru
          _
        %v380 = vld [vmem:[#allocation4] sm:$0x1]
        %v381 = vld [vmem:[#allocation4 + $0x1] sm:$0x1]
        %v382 = vld [vmem:[#allocation4 + $0x2] sm:$0x1]
        %v383 = vlaneseq
        %v384 = vshrl.u32 %v383, 7
        %s385 = smul.u32 %s32, 8
        %v386 = vstv %s385
        %v387 = vadd.s32 %v384, %v386
        %v388 = vcvt.s32.f32 %v387
        %v389 = vlaneseq
        %v390 = vshrl.u32 %v389, 7
        %v391 = vsub.s32 0, %v390
        %v392 = vrot.slane %v380, %v391
        %vm393 = vcmp.eq.f32.partialorder %v388, %v392
        %v394 = vsel %vm393, 1, 0
        %v395 = vcvt.s32.f32 %v394
        %v396 = vlaneseq
        %v397 = vshrl.u32 %v396, 7
        %v398 = vsub.s32 0, %v397
        %v399 = vrot.slane %v381, %v398
        %v400 = vmul.f32 %v395, %v399
        %v401 = vadd.f32 %v380, 1.0
        %v402 = vlaneseq
        %v403 = vshrl.u32 %v402, 7
        %v404 = vsub.s32 0, %v403
        %v405 = vrot.slane %v401, %v404
        %vm406 = vcmp.eq.f32.partialorder %v388, %v405
        %v407 = vsel %vm406, 1, 0
        %v408 = vcvt.s32.f32 %v407
        %v409 = vlaneseq
        %v410 = vshrl.u32 %v409, 7
        %v411 = vsub.s32 0, %v410
        %v412 = vrot.slane %v382, %v411
        %v413 = vmul.f32 %v408, %v412
        %v414 = vadd.f32 %v400, %v413
        %v415 = vld [vmem:[%s235] sm:$0xff]
        %v416 = vld [vmem:[%s235 + $0x8] sm:$0xff]
        %v417 = vld [vmem:[%s235 + $0x10] sm:$0xff]
        %v418 = vld [vmem:[%s235 + $0x18] sm:$0xff]
        %v419 = vld [vmem:[%s235 + $0x20] sm:$0xff]
        %v420 = vld [vmem:[%s235 + $0x28] sm:$0xff]
        %v421 = vld [vmem:[%s235 + $0x30] sm:$0xff]
        %v422 = vld [vmem:[%s235 + $0x38] sm:$0xff]
        %v423 = vld [vmem:[#allocation3] sm:$0xff]
        %v424 = vld [vmem:[#allocation3 + $0x8] sm:$0xff]
        %vm425 = vcmask 130048
        %v427 = vsel %vm425, %v415, 0
        %v430 = vsel %vm425, %v416, 0
        %v433 = vsel %vm425, %v417, 0
        %v436 = vsel %vm425, %v418, 0
        %v439 = vsel %vm425, %v419, 0
        %v442 = vsel %vm425, %v420, 0
        %v445 = vsel %vm425, %v421, 0
        %v448 = vsel %vm425, %v422, 0
        %450 = vmatprep.subr.mxu0 0.0
        %451 = vmatpush1.msra.mxu0 0.0
        %452 = vmatprep.subr.mxu0 0.0
        %453 = vmatpush1.msra.mxu0 0.0
        %454 = vmatprep.subr.mxu0 0.0
        %455 = vmatpush1.msra.mxu0 0.0
        %456 = vmatprep.subr.mxu0 0.0
        %457 = vmatpush1.msra.mxu0 0.0
        %458 = vmatprep.subr.mxu0 0.0
        %459 = vmatpush1.msra.mxu0 0.0
        %460 = vmatprep.subr.mxu0 0.0
        %461 = vmatpush1.msra.mxu0 0.0
        %462 = vmatprep.subr.mxu0 0.0
        %463 = vmatpush1.msra.mxu0 0.0
        %464 = vmatprep.subr.mxu0 0.0
        %465 = vmatpush1.msra.mxu0 0.0
        %466 = vmatprep.subr.mxu0 0.0
        %467 = vmatpush1.msra.mxu0 0.0
        %468 = vmatprep.subr.mxu0 0.0
        %469 = vmatpush1.msra.mxu0 0.0
        %470 = vmatprep.subr.mxu0 0.0
        %471 = vmatpush1.msra.mxu0 0.0
        %472 = vmatprep.subr.mxu0 0.0
        %473 = vmatpush1.msra.mxu0 0.0
        %474 = vmatprep.subr.mxu0 0.0
        %475 = vmatpush1.msra.mxu0 0.0
        %476 = vmatprep.subr.mxu0 0.0
        %477 = vmatpush1.msra.mxu0 0.0
        %478 = vmatprep.subr.mxu0 0.0
        %479 = vmatpush1.msra.mxu0 %v424
        %480 = vmatprep.subr.mxu0 0.0
        %481 = vmatpush1.msra.mxu0 %v423
        %482 = vmatprep.subr.mxu0 0.0
        %483 = vmatpush2.msra.mxu0 0.0
        %484 = vmatprep.subr.mxu0 0.0
        %485 = vmatpush2.msra.mxu0 0.0
        %486 = vmatprep.subr.mxu0 0.0
        %487 = vmatpush2.msra.mxu0 0.0
        %488 = vmatprep.subr.mxu0 0.0
        %489 = vmatpush2.msra.mxu0 0.0
        %490 = vmatprep.subr.mxu0 0.0
        %491 = vmatpush2.msra.mxu0 0.0
        %492 = vmatprep.subr.mxu0 0.0
        %493 = vmatpush2.msra.mxu0 0.0
        %494 = vmatprep.subr.mxu0 0.0
        %495 = vmatpush2.msra.mxu0 0.0
        %496 = vmatprep.subr.mxu0 0.0
        %497 = vmatpush2.msra.mxu0 0.0
        %498 = vmatprep.subr.mxu0 0.0
        %499 = vmatpush2.msra.mxu0 0.0
        %500 = vmatprep.subr.mxu0 0.0
        %501 = vmatpush2.msra.mxu0 0.0
        %502 = vmatprep.subr.mxu0 0.0
        %503 = vmatpush2.msra.mxu0 0.0
        %504 = vmatprep.subr.mxu0 0.0
        %505 = vmatpush2.msra.mxu0 0.0
        %506 = vmatprep.subr.mxu0 0.0
        %507 = vmatpush2.msra.mxu0 0.0
        %508 = vmatprep.subr.mxu0 0.0
        %509 = vmatpush2.msra.mxu0 0.0
        %510 = vmatprep.subr.mxu0 0.0
        %511 = vmatpush2.msra.mxu0 0.0
        %512 = vmatprep.subr.mxu0 0.0
        %513 = vmatpush2.msra.mxu0 0.0
        %514 = vmatprep.mubr.f32.mxu0 0.0
        %515 = vmatmul.mubr.f32.gmra.mxu0 %v427
        %v516 = vpop.f32.mrf.mxu0
        %v517 = vadd.f32 0.0, %v516
        %v518 = vpop.f32.mrf.mxu0
        %519 = vmatprep.mubr.f32.mxu0 0.0
        %520 = vmatmul.mubr.f32.gmra.mxu0 %v430
        %v521 = vpop.f32.mrf.mxu0
        %v522 = vadd.f32 0.0, %v521
        %v523 = vpop.f32.mrf.mxu0
        %524 = vmatprep.mubr.f32.mxu0 0.0
        %525 = vmatmul.mubr.f32.gmra.mxu0 %v433
        %v526 = vpop.f32.mrf.mxu0
        %v527 = vadd.f32 0.0, %v526
        %v528 = vpop.f32.mrf.mxu0
        %529 = vmatprep.mubr.f32.mxu0 0.0
        %530 = vmatmul.mubr.f32.gmra.mxu0 %v436
        %v531 = vpop.f32.mrf.mxu0
        %v532 = vadd.f32 0.0, %v531
        %v533 = vpop.f32.mrf.mxu0
        %534 = vmatprep.mubr.f32.mxu0 0.0
        %535 = vmatmul.mubr.f32.gmra.mxu0 %v439
        %v536 = vpop.f32.mrf.mxu0
        %v537 = vadd.f32 0.0, %v536
        %v538 = vpop.f32.mrf.mxu0
        %539 = vmatprep.mubr.f32.mxu0 0.0
        %540 = vmatmul.mubr.f32.gmra.mxu0 %v442
        %v541 = vpop.f32.mrf.mxu0
        %v542 = vadd.f32 0.0, %v541
        %v543 = vpop.f32.mrf.mxu0
        %544 = vmatprep.mubr.f32.mxu0 0.0
        %545 = vmatmul.mubr.f32.gmra.mxu0 %v445
        %v546 = vpop.f32.mrf.mxu0
        %v547 = vadd.f32 0.0, %v546
        %v548 = vpop.f32.mrf.mxu0
        %549 = vmatprep.mubr.f32.mxu0 0.0
        %550 = vmatmul.mubr.f32.gmra.mxu0 %v448
        %v551 = vpop.f32.mrf.mxu0
        %v552 = vadd.f32 0.0, %v551
        %v553 = vpop.f32.mrf.mxu0
        %554 = vdwg.mxu0
        %v555 = vld [vmem:[#allocation2] sm:$0xff]
        %v556 = vlaneseq
        %v557 = vshrl.u32 %v556, 7
        %v558 = vsub.s32 0, %v557
        %v559 = vrot.slane %v414, %v558
        %v560 = vmul.f32 %v517, %v559
        %v561 = vadd.f32 %v555, %v560
        %v562 = vlaneseq
        %v563 = vshrl.u32 %v562, 7
        %v564 = vsub.s32 1, %v563
        %v565 = vrot.slane %v414, %v564
        %v566 = vmul.f32 %v522, %v565
        %v567 = vadd.f32 %v561, %v566
        %v568 = vlaneseq
        %v569 = vshrl.u32 %v568, 7
        %v570 = vsub.s32 2, %v569
        %v571 = vrot.slane %v414, %v570
        %v572 = vmul.f32 %v527, %v571
        %v573 = vadd.f32 %v567, %v572
        %v574 = vlaneseq
        %v575 = vshrl.u32 %v574, 7
        %v576 = vsub.s32 3, %v575
        %v577 = vrot.slane %v414, %v576
        %v578 = vmul.f32 %v532, %v577
        %v579 = vadd.f32 %v573, %v578
        %v580 = vlaneseq
        %v581 = vshrl.u32 %v580, 7
        %v582 = vsub.s32 4, %v581
        %v583 = vrot.slane %v414, %v582
        %v584 = vmul.f32 %v537, %v583
        %v585 = vadd.f32 %v579, %v584
        %v586 = vlaneseq
        %v587 = vshrl.u32 %v586, 7
        %v588 = vsub.s32 5, %v587
        %v589 = vrot.slane %v414, %v588
        %v590 = vmul.f32 %v542, %v589
        %v591 = vadd.f32 %v585, %v590
        %v592 = vlaneseq
        %v593 = vshrl.u32 %v592, 7
        %v594 = vsub.s32 6, %v593
        %v595 = vrot.slane %v414, %v594
        %v596 = vmul.f32 %v547, %v595
        %v597 = vadd.f32 %v591, %v596
        %v598 = vlaneseq
        %v599 = vshrl.u32 %v598, 7
        %v600 = vsub.s32 7, %v599
        %v601 = vrot.slane %v414, %v600
        %v602 = vmul.f32 %v552, %v601
        %v603 = vadd.f32 %v597, %v602
        %604 = vst [vmem:[#allocation2] sm:$0xff] %v603
        %p605 = scmp.eq.s32.totalorder %s32, 1
        // Predicated region
        $region33: #{tpu_custom_call.1} parent=27 // pred_check
          %p606 = pneg %p605
        $region34: #{tpu_custom_call.1} parent=27 // pred_check_branch
          %608 = sbr.rel (%p606) target = $region36
        $region35: #{tpu_custom_call.1} parent=27 // pred_region
          %v609 = vld [vmem:[#allocation2] sm:$0xff]
          %610 = vst [vmem:[%s215] sm:$0xff] %v609
        $region36: #{tpu_custom_call.1} parent=27 // pred_fallthru
          _
        %s611 = sand.u32 %s119, 1
        %s612 = scalar_lea.sflag [#allocation8], %s611
        %s613 = sand.u32 %s119, 1
        %s614 = smul.addr %s613, 8
        %s615 = scalar_lea.vmem [#allocation7], %s614
        // Predicated region
        $region37: #{tpu_custom_call.1} parent=27 // pred_check
          %p616 = pneg %p129
        $region38: #{tpu_custom_call.1} parent=27 // pred_check_branch
          %618 = sbr.rel (%p616) target = $region40
        $region39: #{tpu_custom_call.1} parent=27 // pred_region
          %s620 = ssub.s32 128, 128
          %621 = vsyncadd %s612, %s620
          %s622 = sadd.s32 %s31, %s30
          %s623 = smul.addr %s29, 2
          %s624 = sadd.s32 %s622, %s623
          %s625 = smul.addr %s624, 128
          %s626 = scalar_lea.hbm %s3, %s625
          %s628 = sshll.u32 %s615, 4
          %s629 = int_to_ptr.vmem [resolvable:$true] %s628
          %631 = dma.vmem_to_hbm [thread:$0]  %s629, 128, %s626, %s612
        $region40: #{tpu_custom_call.1} parent=27 // pred_fallthru
          _
      $region28: #{tpu_custom_call.1} parent=5 // pred_fallthru
        _
      %p632 = scmp.le.s32.totalorder 2, %s18
      // Predicated region
      $region41: #{tpu_custom_call.1} parent=5 // pred_check
        %p633 = pneg %p632
      $region42: #{tpu_custom_call.1} parent=5 // pred_check_branch
        %635 = sbr.rel (%p633) target = $region44
      $region43: #{tpu_custom_call.1} parent=5 // pred_region
        %s636 = ssub.s32 %s18, 2
        // Predicated region
        $region45: #{tpu_custom_call.1} parent=43 // pred_check
          %p637 = pneg %p135
        $region46: #{tpu_custom_call.1} parent=43 // pred_check_branch
          %639 = sbr.rel (%p637) target = $region48
        $region47: #{tpu_custom_call.1} parent=43 // pred_region
          %s640 = sand.u32 %s120, 1
          %s641 = scalar_lea.sflag [#allocation8], %s640
          %s642 = sand.u32 %s120, 1
          %s643 = smul.addr %s642, 8
          %s644 = scalar_lea.vmem [#allocation7], %s643
          %645 = dma.done %s641, 128
        $region48: #{tpu_custom_call.1} parent=43 // pred_fallthru
          _
      $region44: #{tpu_custom_call.1} parent=5 // pred_fallthru
        _
    $region6: #{tpu_custom_call.1} parent=1 // loop_footer
      %s22 = sadd.s32 1, %s18
    $region7: #{tpu_custom_call.1} parent=1 // loop_footer_branch
      %17 = sbr.rel target = $region3
    $region8: #{tpu_custom_call.1} parent=1 // loop_exit
      _
    %646 = vsyncpa [#allocation8], 1
    %s647 = scalar_lea.sflag [#allocation8], 1
    %648 = vsyncpa %s647, 1

</llo_original>
